<compile_context>
chip_gen: v6e
topology: v6e:2x2x1
jax: 0.10.0
libtpu: 0.0.40
codegen_flags: <defaults>
</compile_context>

<pallas_src>
import jax
import jax.numpy as jnp
from jax.experimental import pallas as pl
from jax.experimental.pallas import tpu as pltpu

OUT_PAD = 128  # lane-dense width for the final (fan_out=1) layer


def _mlp_kernel(x_ref, w1_ref, b1_ref, w2_ref, b2_ref,
                w3_ref, b3_ref, w4_ref, b4_ref, o_ref):
    # Matmuls in bf16 (f32 accumulation on the MXU); bias-add / ReLU in f32.
    x = x_ref[...].astype(jnp.bfloat16)

    # fc1 + relu
    h = jnp.dot(x, w1_ref[...], preferred_element_type=jnp.float32) + b1_ref[...]
    h = jnp.maximum(h, 0.0)
    # dropout (eval mode) == identity

    # fc2 + relu
    h = jnp.dot(h.astype(jnp.bfloat16), w2_ref[...],
                preferred_element_type=jnp.float32) + b2_ref[...]
    h = jnp.maximum(h, 0.0)
    # dropout (eval mode) == identity

    # fc3 + relu
    h = jnp.dot(h.astype(jnp.bfloat16), w3_ref[...],
                preferred_element_type=jnp.float32) + b3_ref[...]
    h = jnp.maximum(h, 0.0)

    # fc4 (no activation) -> lane-dense 128-wide slab (only lane 0 is real)
    o_ref[...] = (jnp.dot(h.astype(jnp.bfloat16), w4_ref[...],
                          preferred_element_type=jnp.float32)
                  + b4_ref[...]).astype(o_ref.dtype)


def _round_up(n, m):
    return (n + m - 1) // m * m


def blackjack_forward(x, params, *, block_b=1024):
    """x: (B, input_size) f32. Returns (B, 1) f32."""
    B, F = x.shape
    tb = min(block_b, _round_up(B, 8))   # batch tile, multiple of 8
    bp = _round_up(B, tb)
    if bp != B:
        x = jnp.pad(x, ((0, bp - B), (0, 0)))

    def const_spec(a):
        return pl.BlockSpec(a.shape, lambda i: (0, 0))   # VMEM-resident

    args = (x,
            params["w1"], params["b1"],
            params["w2"], params["b2"],
            params["w3"], params["b3"],
            params["w4"], params["b4"])

    in_specs = [pl.BlockSpec((tb, F), lambda i: (i, 0))]
    in_specs += [const_spec(a) for a in args[1:]]

    out = pl.pallas_call(
        _mlp_kernel,
        out_shape=jax.ShapeDtypeStruct((bp, OUT_PAD), jnp.float32),
        grid=(pl.cdiv(bp, tb),),
        in_specs=in_specs,
        out_specs=pl.BlockSpec((tb, OUT_PAD), lambda i: (i, 0)),
        compiler_params=pltpu.CompilerParams(
            dimension_semantics=("parallel",)),
    )(*args)
    return out[:B, :1]


def init_params(key, input_size):
    """Deterministic init mirroring the PyTorch module's __init__.

    kaiming_normal_(relu): std = sqrt(2 / fan_in)            (fc1..fc3)
    xavier_normal_:        std = sqrt(2 / (fan_in + fan_out)) (fc4)
    biases: PyTorch Linear default U(-1/sqrt(fan_in), 1/sqrt(fan_in)).
    Weights stored transposed (in, out) in bf16; biases f32 (1, out).
    fc4 weight/bias zero-padded to OUT_PAD lanes for a lane-dense store.
    """
    dims = [(input_size, 128), (128, 64), (64, 32), (32, 1)]
    keys = jax.random.split(key, 8)
    params = {}
    for i, (fan_in, fan_out) in enumerate(dims, start=1):
        if i < 4:
            std = (2.0 / fan_in) ** 0.5               # kaiming normal, relu gain
        else:
            std = (2.0 / (fan_in + fan_out)) ** 0.5   # xavier normal
        w = std * jax.random.normal(keys[2 * (i - 1)], (fan_in, fan_out), jnp.float32)
        bound = 1.0 / (fan_in ** 0.5)
        b = jax.random.uniform(keys[2 * (i - 1) + 1], (1, fan_out), jnp.float32,
                               minval=-bound, maxval=bound)
        if i == 4:  # pad final layer to 128 output lanes
            w = jnp.pad(w, ((0, 0), (0, OUT_PAD - fan_out)))
            b = jnp.pad(b, ((0, 0), (0, OUT_PAD - fan_out)))
        params[f"w{i}"] = w.astype(jnp.bfloat16)
        params[f"b{i}"] = b.astype(jnp.float32)
    return params


def reference_forward(x, params):
    """Pure-JAX reference with identical numerics (bf16 matmuls, f32 accum)."""
    h = jnp.dot(x.astype(jnp.bfloat16), params["w1"],
                preferred_element_type=jnp.float32) + params["b1"]
    h = jnp.maximum(h, 0.0)
    h = jnp.dot(h.astype(jnp.bfloat16), params["w2"],
                preferred_element_type=jnp.float32) + params["b2"]
    h = jnp.maximum(h, 0.0)
    h = jnp.dot(h.astype(jnp.bfloat16), params["w3"],
                preferred_element_type=jnp.float32) + params["b3"]
    h = jnp.maximum(h, 0.0)
    out = jnp.dot(h.astype(jnp.bfloat16), params["w4"],
                  preferred_element_type=jnp.float32) + params["b4"]
    return out[:, :1]


if __name__ == "__main__":
    input_size = 8   # number of blackjack features
    batch = 8        # demo scale; kernel tiles up to block_b=1024 rows per step

    key = jax.random.PRNGKey(0)
    k_x, k_p = jax.random.split(key)
    x = jax.random.normal(k_x, (batch, input_size), jnp.float32)
    params = init_params(k_p, input_size)

    out = blackjack_forward(x, params)
    out = jax.block_until_ready(out)

    ref = reference_forward(x, params)
    assert out.shape == (batch, 1), out.shape
    assert jnp.allclose(out, ref, atol=2e-3, rtol=2e-3), "mismatch vs JAX reference"

    print("KERNEL_OK")
</pallas_src>

<mosaic_0001>
module attributes {stable_mosaic.version = 11 : i64} {
  func.func @_mlp_kernel(%arg0: i32, %arg1: memref<8x8xf32, #tpu.memory_space<vmem>>, %arg2: memref<8x128xbf16, #tpu.memory_space<vmem>>, %arg3: memref<1x128xf32, #tpu.memory_space<vmem>>, %arg4: memref<128x64xbf16, #tpu.memory_space<vmem>>, %arg5: memref<1x64xf32, #tpu.memory_space<vmem>>, %arg6: memref<64x32xbf16, #tpu.memory_space<vmem>>, %arg7: memref<1x32xf32, #tpu.memory_space<vmem>>, %arg8: memref<32x128xbf16, #tpu.memory_space<vmem>>, %arg9: memref<1x128xf32, #tpu.memory_space<vmem>>, %arg10: memref<8x128xf32, #tpu.memory_space<vmem>>) attributes {dimension_semantics = [#tpu.dimension_semantics<parallel>], iteration_bounds = array<i64: 1>, scalar_prefetch = 0 : i64, scratch_operands = 0 : i64, tpu.core_type = #tpu.core_type<tc>, window_params = [{transform_indices = @transform_0, window_bounds = array<i64: 8, 8>}, {pipeline_mode = #tpu.pipeline_mode<synchronous>, transform_indices = @transform_1, window_bounds = array<i64: 8, 128>}, {pipeline_mode = #tpu.pipeline_mode<synchronous>, transform_indices = @transform_2, window_bounds = array<i64: 1, 128>}, {pipeline_mode = #tpu.pipeline_mode<synchronous>, transform_indices = @transform_3, window_bounds = array<i64: 128, 64>}, {pipeline_mode = #tpu.pipeline_mode<synchronous>, transform_indices = @transform_4, window_bounds = array<i64: 1, 64>}, {pipeline_mode = #tpu.pipeline_mode<synchronous>, transform_indices = @transform_5, window_bounds = array<i64: 64, 32>}, {pipeline_mode = #tpu.pipeline_mode<synchronous>, transform_indices = @transform_6, window_bounds = array<i64: 1, 32>}, {pipeline_mode = #tpu.pipeline_mode<synchronous>, transform_indices = @transform_7, window_bounds = array<i64: 32, 128>}, {pipeline_mode = #tpu.pipeline_mode<synchronous>, transform_indices = @transform_8, window_bounds = array<i64: 1, 128>}, {transform_indices = @transform_9, window_bounds = array<i64: 8, 128>}]} {
    %c0 = arith.constant 0 : index
    %c0_0 = arith.constant 0 : index
    %0 = vector.load %arg1[%c0, %c0_0] : memref<8x8xf32, #tpu.memory_space<vmem>>, vector<8x8xf32>
    %1 = arith.truncf %0 : vector<8x8xf32> to vector<8x8xbf16>
    %c0_1 = arith.constant 0 : index
    %c0_2 = arith.constant 0 : index
    %2 = vector.load %arg2[%c0_1, %c0_2] : memref<8x128xbf16, #tpu.memory_space<vmem>>, vector<8x128xbf16>
    %cst = arith.constant dense<0.000000e+00> : vector<8x128xf32>
    %3 = tpu.matmul %1, %2, %cst {dimension_numbers = #tpu.dot_dimension_numbers<[1], [0], [0], [1], [0, 0, 1, 1], [], []>} : vector<8x8xbf16>, vector<8x128xbf16>, vector<8x128xf32> -> vector<8x128xf32>
    %c0_3 = arith.constant 0 : index
    %c0_4 = arith.constant 0 : index
    %4 = vector.load %arg3[%c0_3, %c0_4] : memref<1x128xf32, #tpu.memory_space<vmem>>, vector<1x128xf32>
    %5 = vector.broadcast %4 : vector<1x128xf32> to vector<8x128xf32>
    %6 = arith.addf %3, %5 : vector<8x128xf32>
    %cst_5 = arith.constant 0.000000e+00 : f32
    %7 = vector.broadcast %cst_5 : f32 to vector<8x128xf32>
    %8 = arith.maximumf %6, %7 : vector<8x128xf32>
    %9 = arith.truncf %8 : vector<8x128xf32> to vector<8x128xbf16>
    %c0_6 = arith.constant 0 : index
    %c0_7 = arith.constant 0 : index
    %10 = vector.load %arg4[%c0_6, %c0_7] : memref<128x64xbf16, #tpu.memory_space<vmem>>, vector<128x64xbf16>
    %cst_8 = arith.constant dense<0.000000e+00> : vector<8x64xf32>
    %11 = tpu.matmul %9, %10, %cst_8 {dimension_numbers = #tpu.dot_dimension_numbers<[1], [0], [0], [1], [0, 0, 1, 1], [], []>} : vector<8x128xbf16>, vector<128x64xbf16>, vector<8x64xf32> -> vector<8x64xf32>
    %c0_9 = arith.constant 0 : index
    %c0_10 = arith.constant 0 : index
    %12 = vector.load %arg5[%c0_9, %c0_10] : memref<1x64xf32, #tpu.memory_space<vmem>>, vector<1x64xf32>
    %13 = vector.broadcast %12 : vector<1x64xf32> to vector<8x64xf32>
    %14 = arith.addf %11, %13 : vector<8x64xf32>
    %cst_11 = arith.constant 0.000000e+00 : f32
    %15 = vector.broadcast %cst_11 : f32 to vector<8x64xf32>
    %16 = arith.maximumf %14, %15 : vector<8x64xf32>
    %17 = arith.truncf %16 : vector<8x64xf32> to vector<8x64xbf16>
    %c0_12 = arith.constant 0 : index
    %c0_13 = arith.constant 0 : index
    %18 = vector.load %arg6[%c0_12, %c0_13] : memref<64x32xbf16, #tpu.memory_space<vmem>>, vector<64x32xbf16>
    %cst_14 = arith.constant dense<0.000000e+00> : vector<8x32xf32>
    %19 = tpu.matmul %17, %18, %cst_14 {dimension_numbers = #tpu.dot_dimension_numbers<[1], [0], [0], [1], [0, 0, 1, 1], [], []>} : vector<8x64xbf16>, vector<64x32xbf16>, vector<8x32xf32> -> vector<8x32xf32>
    %c0_15 = arith.constant 0 : index
    %c0_16 = arith.constant 0 : index
    %20 = vector.load %arg7[%c0_15, %c0_16] : memref<1x32xf32, #tpu.memory_space<vmem>>, vector<1x32xf32>
    %21 = vector.broadcast %20 : vector<1x32xf32> to vector<8x32xf32>
    %22 = arith.addf %19, %21 : vector<8x32xf32>
    %cst_17 = arith.constant 0.000000e+00 : f32
    %23 = vector.broadcast %cst_17 : f32 to vector<8x32xf32>
    %24 = arith.maximumf %22, %23 : vector<8x32xf32>
    %25 = arith.truncf %24 : vector<8x32xf32> to vector<8x32xbf16>
    %c0_18 = arith.constant 0 : index
    %c0_19 = arith.constant 0 : index
    %26 = vector.load %arg8[%c0_18, %c0_19] : memref<32x128xbf16, #tpu.memory_space<vmem>>, vector<32x128xbf16>
    %cst_20 = arith.constant dense<0.000000e+00> : vector<8x128xf32>
    %27 = tpu.matmul %25, %26, %cst_20 {dimension_numbers = #tpu.dot_dimension_numbers<[1], [0], [0], [1], [0, 0, 1, 1], [], []>} : vector<8x32xbf16>, vector<32x128xbf16>, vector<8x128xf32> -> vector<8x128xf32>
    %c0_21 = arith.constant 0 : index
    %c0_22 = arith.constant 0 : index
    %28 = vector.load %arg9[%c0_21, %c0_22] : memref<1x128xf32, #tpu.memory_space<vmem>>, vector<1x128xf32>
    %29 = vector.broadcast %28 : vector<1x128xf32> to vector<8x128xf32>
    %30 = arith.addf %27, %29 : vector<8x128xf32>
    %c0_23 = arith.constant 0 : index
    %c0_24 = arith.constant 0 : index
    %31 = vector.load %arg10[%c0_23, %c0_24] : memref<8x128xf32, #tpu.memory_space<vmem>>, vector<8x128xf32>
    tpu.vector_store %arg10[%c0_23, %c0_24], %30 {strides = array<i32>} : memref<8x128xf32, #tpu.memory_space<vmem>>, vector<8x128xf32>,
    return
  }
  func.func @transform_0(%arg0: i32) -> (i32, i32) {
    %c0_i32 = arith.constant 0 : i32
    %c0_i32_0 = arith.constant 0 : i32
    return %arg0, %c0_i32 : i32, i32
  }
  func.func @transform_1(%arg0: i32) -> (i32, i32) {
    %c0_i32 = arith.constant 0 : i32
    %c0_i32_0 = arith.constant 0 : i32
    %c0_i32_1 = arith.constant 0 : i32
    return %c0_i32, %c0_i32_0 : i32, i32
  }
  func.func @transform_2(%arg0: i32) -> (i32, i32) {
    %c0_i32 = arith.constant 0 : i32
    %c0_i32_0 = arith.constant 0 : i32
    %c0_i32_1 = arith.constant 0 : i32
    return %c0_i32, %c0_i32_0 : i32, i32
  }
  func.func @transform_3(%arg0: i32) -> (i32, i32) {
    %c0_i32 = arith.constant 0 : i32
    %c0_i32_0 = arith.constant 0 : i32
    %c0_i32_1 = arith.constant 0 : i32
    return %c0_i32, %c0_i32_0 : i32, i32
  }
  func.func @transform_4(%arg0: i32) -> (i32, i32) {
    %c0_i32 = arith.constant 0 : i32
    %c0_i32_0 = arith.constant 0 : i32
    %c0_i32_1 = arith.constant 0 : i32
    return %c0_i32, %c0_i32_0 : i32, i32
  }
  func.func @transform_5(%arg0: i32) -> (i32, i32) {
    %c0_i32 = arith.constant 0 : i32
    %c0_i32_0 = arith.constant 0 : i32
    %c0_i32_1 = arith.constant 0 : i32
    return %c0_i32, %c0_i32_0 : i32, i32
  }
  func.func @transform_6(%arg0: i32) -> (i32, i32) {
    %c0_i32 = arith.constant 0 : i32
    %c0_i32_0 = arith.constant 0 : i32
    %c0_i32_1 = arith.constant 0 : i32
    return %c0_i32, %c0_i32_0 : i32, i32
  }
  func.func @transform_7(%arg0: i32) -> (i32, i32) {
    %c0_i32 = arith.constant 0 : i32
    %c0_i32_0 = arith.constant 0 : i32
    %c0_i32_1 = arith.constant 0 : i32
    return %c0_i32, %c0_i32_0 : i32, i32
  }
  func.func @transform_8(%arg0: i32) -> (i32, i32) {
    %c0_i32 = arith.constant 0 : i32
    %c0_i32_0 = arith.constant 0 : i32
    %c0_i32_1 = arith.constant 0 : i32
    return %c0_i32, %c0_i32_0 : i32, i32
  }
  func.func @transform_9(%arg0: i32) -> (i32, i32) {
    %c0_i32 = arith.constant 0 : i32
    %c0_i32_0 = arith.constant 0 : i32
    return %arg0, %c0_i32 : i32, i32
  }
}

</mosaic_0001>

<llo_original>
// kernel: tpu_custom_call.1
$region0: #{tpu_custom_call.1}
  #allocation0 [shape = 'u32[]', space=smem, size = 0x4, offset = 0x4, fixed_abs, tag = 'smem constant byte address 0x4 - core index']
  #allocation1 [shape = 'u32[144,128]{1,0:T(1,128)}', space=vmem, size = 0x12000, scoped, tag = 'internal scratch']
  %s0 = inlined_call_operand.vmem [shape: f32[8,8], index: 0, kind: input, shape index: {}]
  %s1 = inlined_call_operand.vmem [shape: bf16[8,128], index: 1, kind: input, shape index: {}]
  %s2 = inlined_call_operand.vmem [shape: f32[1,128], index: 2, kind: input, shape index: {}]
  %s3 = inlined_call_operand.vmem [shape: bf16[128,64], index: 3, kind: input, shape index: {}]
  %s4 = inlined_call_operand.vmem [shape: f32[1,64], index: 4, kind: input, shape index: {}]
  %s5 = inlined_call_operand.vmem [shape: bf16[64,32], index: 5, kind: input, shape index: {}]
  %s6 = inlined_call_operand.vmem [shape: f32[1,32], index: 6, kind: input, shape index: {}]
  %s7 = inlined_call_operand.vmem [shape: bf16[32,128], index: 7, kind: input, shape index: {}]
  %s8 = inlined_call_operand.vmem [shape: f32[1,128], index: 8, kind: input, shape index: {}]
  %s9 = inlined_call_operand.hbm [shape: f32[8,128], index: 9, kind: output, shape index: {}]
  %s10 = sld [smem:[#allocation0]]
  $region46: #{tpu_custom_call.1} parent=0
    _
  %s12 = ssub.s32 1, %s10
  %s13 = scalar_select 0, %s12, %s10
  $region1: #{tpu_custom_call.1} parent=0
    #allocation2 [shape = 'u8[4096]{0}', space=vmem, size = 0x1000, scoped, tag = 'output window, operand 0, single buffered']
    #allocation3 [shape = 's32[1]{0}', space=sflag, size = 0x4, scoped, tag = 'scoped memory for tpu_custom_call.1']
    %14 = vsyncpa [#allocation3], 0
    // Predicated region
    $region2: #{tpu_custom_call.1} parent=1 // pred_check
      _
    $region3: #{tpu_custom_call.1} parent=1 // pred_check_branch
      %16 = sbr.rel (0) target = $region5
    $region4: #{tpu_custom_call.1} parent=1 // pred_region
      _
    $region5: #{tpu_custom_call.1} parent=1 // pred_fallthru
      _
    // Predicated region
    $region6: #{tpu_custom_call.1} parent=1 // pred_check
      _
    $region7: #{tpu_custom_call.1} parent=1 // pred_check_branch
      %18 = sbr.rel (0) target = $region9
    $region8: #{tpu_custom_call.1} parent=1 // pred_region
      _
    $region9: #{tpu_custom_call.1} parent=1 // pred_fallthru
      _
    // Predicated region
    $region10: #{tpu_custom_call.1} parent=1 // pred_check
      _
    $region11: #{tpu_custom_call.1} parent=1 // pred_check_branch
      %20 = sbr.rel (0) target = $region13
    $region12: #{tpu_custom_call.1} parent=1 // pred_region
      _
    $region13: #{tpu_custom_call.1} parent=1 // pred_fallthru
      _
    // Predicated region
    $region14: #{tpu_custom_call.1} parent=1 // pred_check
      _
    $region15: #{tpu_custom_call.1} parent=1 // pred_check_branch
      %22 = sbr.rel (0) target = $region17
    $region16: #{tpu_custom_call.1} parent=1 // pred_region
      _
    $region17: #{tpu_custom_call.1} parent=1 // pred_fallthru
      _
    // Predicated region
    $region18: #{tpu_custom_call.1} parent=1 // pred_check
      _
    $region19: #{tpu_custom_call.1} parent=1 // pred_check_branch
      %24 = sbr.rel (0) target = $region21
    $region20: #{tpu_custom_call.1} parent=1 // pred_region
      _
    $region21: #{tpu_custom_call.1} parent=1 // pred_fallthru
      _
    // Predicated region
    $region22: #{tpu_custom_call.1} parent=1 // pred_check
      _
    $region23: #{tpu_custom_call.1} parent=1 // pred_check_branch
      %26 = sbr.rel (0) target = $region25
    $region24: #{tpu_custom_call.1} parent=1 // pred_region
      _
    $region25: #{tpu_custom_call.1} parent=1 // pred_fallthru
      _
    // Predicated region
    $region26: #{tpu_custom_call.1} parent=1 // pred_check
      _
    $region27: #{tpu_custom_call.1} parent=1 // pred_check_branch
      %28 = sbr.rel (0) target = $region29
    $region28: #{tpu_custom_call.1} parent=1 // pred_region
      _
    $region29: #{tpu_custom_call.1} parent=1 // pred_fallthru
      _
    // Predicated region
    $region30: #{tpu_custom_call.1} parent=1 // pred_check
      _
    $region31: #{tpu_custom_call.1} parent=1 // pred_check_branch
      %30 = sbr.rel (0) target = $region33
    $region32: #{tpu_custom_call.1} parent=1 // pred_region
      _
    $region33: #{tpu_custom_call.1} parent=1 // pred_fallthru
      _
    // Predicated region
    $region34: #{tpu_custom_call.1} parent=1 // pred_check
      _
    $region35: #{tpu_custom_call.1} parent=1 // pred_check_branch
      %32 = sbr.rel (0) target = $region37
    $region36: #{tpu_custom_call.1} parent=1 // pred_region
      _
    $region37: #{tpu_custom_call.1} parent=1 // pred_fallthru
      _
    %v34 = vld [vmem:[%s0] sm:$0xff]
    %v35 = vpack.c.bf16 %v34, %v34
    %v36 = vld [vmem:[%s1] sm:$0xf]
    %v37 = vld [vmem:[%s2] sm:$0x1]
    %v39 = vlaneseq
    %v40 = vshrl.u32 %v39, 7
    %v41 = vsub.s32 0, %v40
    %v42 = vrot.slane %v37, %v41
    %vm44 = vcmask 64512
    %v46 = vsel %vm44, %v35, 0
    %vm48 = vcmask 1043456
    %v50 = vsel %vm48, %v36, 0
    %52 = vmatprep.subr.bf16.mxu0 0
    %53 = vmatpush1.bf16.msra.mxu0 0
    %54 = vmatprep.subr.bf16.mxu0 0
    %55 = vmatpush1.bf16.msra.mxu0 0
    %56 = vmatprep.subr.bf16.mxu0 0
    %57 = vmatpush1.bf16.msra.mxu0 0
    %58 = vmatprep.subr.bf16.mxu0 0
    %59 = vmatpush1.bf16.msra.mxu0 0
    %60 = vmatprep.subr.bf16.mxu0 0
    %61 = vmatpush1.bf16.msra.mxu0 0
    %62 = vmatprep.subr.bf16.mxu0 0
    %63 = vmatpush1.bf16.msra.mxu0 0
    %64 = vmatprep.subr.bf16.mxu0 0
    %65 = vmatpush1.bf16.msra.mxu0 0
    %66 = vmatprep.subr.bf16.mxu0 0
    %67 = vmatpush1.bf16.msra.mxu0 %v50
    %68 = vmatprep.subr.bf16.mxu0 0
    %69 = vmatpush2.bf16.msra.mxu0 0
    %70 = vmatprep.subr.bf16.mxu0 0
    %71 = vmatpush2.bf16.msra.mxu0 0
    %72 = vmatprep.subr.bf16.mxu0 0
    %73 = vmatpush2.bf16.msra.mxu0 0
    %74 = vmatprep.subr.bf16.mxu0 0
    %75 = vmatpush2.bf16.msra.mxu0 0
    %76 = vmatprep.subr.bf16.mxu0 0
    %77 = vmatpush2.bf16.msra.mxu0 0
    %78 = vmatprep.subr.bf16.mxu0 0
    %79 = vmatpush2.bf16.msra.mxu0 0
    %80 = vmatprep.subr.bf16.mxu0 0
    %81 = vmatpush2.bf16.msra.mxu0 0
    %82 = vmatprep.subr.bf16.mxu0 0
    %83 = vmatpush2.bf16.msra.mxu0 0
    %84 = vmatprep.mubr.bf16.mxu0 0
    %85 = vmatmul.mubr.bf16.gmra.mxu0 %v46
    %v86 = vpop.f32.mrf.mxu0
    %v87 = vadd.f32 %v42, %v86
    %v88 = vpop.f32.mrf.mxu0
    %v89 = vpop.f32.mrf.mxu0
    %v90 = vpop.f32.mrf.mxu0
    %91 = vdwg.mxu0
    %v92 = vmax.f32 %v87, 0.0
    %v93 = vpack.c.bf16 %v92, %v92
    %v94 = vld [vmem:[%s3] sm:$0xf]
    %v95 = vld [vmem:[%s3 + $0x4] sm:$0xf]
    %v96 = vld [vmem:[%s3 + $0x8] sm:$0xf]
    %v97 = vld [vmem:[%s3 + $0xc] sm:$0xf]
    %v98 = vld [vmem:[%s3 + $0x10] sm:$0xf]
    %v99 = vld [vmem:[%s3 + $0x14] sm:$0xf]
    %v100 = vld [vmem:[%s3 + $0x18] sm:$0xf]
    %v101 = vld [vmem:[%s3 + $0x1c] sm:$0xf]
    %v102 = vld [vmem:[%s3 + $0x20] sm:$0xf]
    %v103 = vld [vmem:[%s3 + $0x24] sm:$0xf]
    %v104 = vld [vmem:[%s3 + $0x28] sm:$0xf]
    %v105 = vld [vmem:[%s3 + $0x2c] sm:$0xf]
    %v106 = vld [vmem:[%s3 + $0x30] sm:$0xf]
    %v107 = vld [vmem:[%s3 + $0x34] sm:$0xf]
    %v108 = vld [vmem:[%s3 + $0x38] sm:$0xf]
    %v109 = vld [vmem:[%s3 + $0x3c] sm:$0xf]
    %v110 = vld [vmem:[%s4] sm:$0x1]
    %v112 = vlaneseq
    %v113 = vshrl.u32 %v112, 7
    %v114 = vsub.s32 0, %v113
    %v115 = vrot.slane %v110, %v114
    %v133 = vunpack.c.l.b16 %v94
    %v134 = vunpack.c.l.b16 %v95
    %v135 = vunpack.c.l.b16 %v96
    %v136 = vunpack.c.l.b16 %v97
    %v137 = vunpack.c.l.b16 %v98
    %v138 = vunpack.c.l.b16 %v99
    %v139 = vunpack.c.l.b16 %v100
    %v140 = vunpack.c.l.b16 %v101
    %v141 = vunpack.c.l.b16 %v102
    %v142 = vunpack.c.l.b16 %v103
    %v143 = vunpack.c.l.b16 %v104
    %v144 = vunpack.c.l.b16 %v105
    %v145 = vunpack.c.l.b16 %v106
    %v146 = vunpack.c.l.b16 %v107
    %v147 = vunpack.c.l.b16 %v108
    %v148 = vunpack.c.l.b16 %v109
    %v149 = vpack.c.b16 %v134, %v133
    %v150 = vpack.c.b16 %v136, %v135
    %v151 = vpack.c.b16 %v138, %v137
    %v152 = vpack.c.b16 %v140, %v139
    %v153 = vpack.c.b16 %v142, %v141
    %v154 = vpack.c.b16 %v144, %v143
    %v155 = vpack.c.b16 %v146, %v145
    %v156 = vpack.c.b16 %v148, %v147
    %165 = vmatprep.subr.bf16.mxu0 0
    %166 = vmatpush1.bf16.msra.mxu0 %v156
    %167 = vmatprep.subr.bf16.mxu0 0
    %168 = vmatpush1.bf16.msra.mxu0 %v155
    %169 = vmatprep.subr.bf16.mxu0 0
    %170 = vmatpush1.bf16.msra.mxu0 %v154
    %171 = vmatprep.subr.bf16.mxu0 0
    %172 = vmatpush1.bf16.msra.mxu0 %v153
    %173 = vmatprep.subr.bf16.mxu0 0
    %174 = vmatpush1.bf16.msra.mxu0 %v152
    %175 = vmatprep.subr.bf16.mxu0 0
    %176 = vmatpush1.bf16.msra.mxu0 %v151
    %177 = vmatprep.subr.bf16.mxu0 0
    %178 = vmatpush1.bf16.msra.mxu0 %v150
    %179 = vmatprep.subr.bf16.mxu0 0
    %180 = vmatpush1.bf16.msra.mxu0 %v149
    %181 = vmatprep.subr.bf16.mxu0 0
    %182 = vmatpush2.bf16.msra.mxu0 0
    %183 = vmatprep.subr.bf16.mxu0 0
    %184 = vmatpush2.bf16.msra.mxu0 0
    %185 = vmatprep.subr.bf16.mxu0 0
    %186 = vmatpush2.bf16.msra.mxu0 0
    %187 = vmatprep.subr.bf16.mxu0 0
    %188 = vmatpush2.bf16.msra.mxu0 0
    %189 = vmatprep.subr.bf16.mxu0 0
    %190 = vmatpush2.bf16.msra.mxu0 0
    %191 = vmatprep.subr.bf16.mxu0 0
    %192 = vmatpush2.bf16.msra.mxu0 0
    %193 = vmatprep.subr.bf16.mxu0 0
    %194 = vmatpush2.bf16.msra.mxu0 0
    %195 = vmatprep.subr.bf16.mxu0 0
    %196 = vmatpush2.bf16.msra.mxu0 0
    %197 = vmatprep.mubr.bf16.mxu0 0
    %198 = vmatmul.mubr.bf16.gmra.mxu0 %v93
    %v199 = vpop.f32.mrf.mxu0
    %v200 = vadd.f32 %v115, %v199
    %v201 = vpop.f32.mrf.mxu0
    %v202 = vpop.f32.mrf.mxu0
    %v203 = vpop.f32.mrf.mxu0
    %204 = vdwg.mxu0
    %v205 = vmax.f32 %v200, 0.0
    %v206 = vpack.c.bf16 %v205, %v205
    %v207 = vld [vmem:[%s5] sm:$0xf]
    %v208 = vld [vmem:[%s5 + $0x4] sm:$0xf]
    %v209 = vld [vmem:[%s5 + $0x8] sm:$0xf]
    %v210 = vld [vmem:[%s5 + $0xc] sm:$0xf]
    %v211 = vld [vmem:[%s5 + $0x10] sm:$0xf]
    %v212 = vld [vmem:[%s5 + $0x14] sm:$0xf]
    %v213 = vld [vmem:[%s5 + $0x18] sm:$0xf]
    %v214 = vld [vmem:[%s5 + $0x1c] sm:$0xf]
    %v215 = vld [vmem:[%s6] sm:$0x1]
    %v217 = vlaneseq
    %v218 = vshrl.u32 %v217, 7
    %v219 = vsub.s32 0, %v218
    %v220 = vrot.slane %v215, %v219
    %v230 = vunpack.c.l.b16 %v207
    %v231 = vunpack.c.l.b16 %v208
    %v232 = vunpack.c.l.b16 %v209
    %v233 = vunpack.c.l.b16 %v210
    %v234 = vunpack.c.l.b16 %v211
    %v235 = vunpack.c.l.b16 %v212
    %v236 = vunpack.c.l.b16 %v213
    %v237 = vunpack.c.l.b16 %v214
    %v238 = vpack.c.b16 %v231, %v230
    %v239 = vpack.c.b16 %v233, %v232
    %v240 = vpack.c.b16 %v235, %v234
    %v241 = vpack.c.b16 %v237, %v236
    %vm246 = vcmask 523264
    %v248 = vsel %vm246, %v206, 0
    %250 = vmatprep.subr.bf16.mxu0 0
    %251 = vmatpush1.bf16.msra.mxu0 0
    %252 = vmatprep.subr.bf16.mxu0 0
    %253 = vmatpush1.bf16.msra.mxu0 0
    %254 = vmatprep.subr.bf16.mxu0 0
    %255 = vmatpush1.bf16.msra.mxu0 0
    %256 = vmatprep.subr.bf16.mxu0 0
    %257 = vmatpush1.bf16.msra.mxu0 0
    %258 = vmatprep.subr.bf16.mxu0 0
    %259 = vmatpush1.bf16.msra.mxu0 %v241
    %260 = vmatprep.subr.bf16.mxu0 0
    %261 = vmatpush1.bf16.msra.mxu0 %v240
    %262 = vmatprep.subr.bf16.mxu0 0
    %263 = vmatpush1.bf16.msra.mxu0 %v239
    %264 = vmatprep.subr.bf16.mxu0 0
    %265 = vmatpush1.bf16.msra.mxu0 %v238
    %266 = vmatprep.subr.bf16.mxu0 0
    %267 = vmatpush2.bf16.msra.mxu0 0
    %268 = vmatprep.subr.bf16.mxu0 0
    %269 = vmatpush2.bf16.msra.mxu0 0
    %270 = vmatprep.subr.bf16.mxu0 0
    %271 = vmatpush2.bf16.msra.mxu0 0
    %272 = vmatprep.subr.bf16.mxu0 0
    %273 = vmatpush2.bf16.msra.mxu0 0
    %274 = vmatprep.subr.bf16.mxu0 0
    %275 = vmatpush2.bf16.msra.mxu0 0
    %276 = vmatprep.subr.bf16.mxu0 0
    %277 = vmatpush2.bf16.msra.mxu0 0
    %278 = vmatprep.subr.bf16.mxu0 0
    %279 = vmatpush2.bf16.msra.mxu0 0
    %280 = vmatprep.subr.bf16.mxu0 0
    %281 = vmatpush2.bf16.msra.mxu0 0
    %282 = vmatprep.mubr.bf16.mxu0 0
    %283 = vmatmul.mubr.bf16.gmra.mxu0 %v248
    %v284 = vpop.f32.mrf.mxu0
    %v285 = vadd.f32 %v220, %v284
    %v286 = vpop.f32.mrf.mxu0
    %v287 = vpop.f32.mrf.mxu0
    %v288 = vpop.f32.mrf.mxu0
    %289 = vdwg.mxu0
    %v290 = vmax.f32 %v285, 0.0
    %v291 = vpack.c.bf16 %v290, %v290
    %v292 = vld [vmem:[%s7] sm:$0xf]
    %v293 = vld [vmem:[%s7 + $0x4] sm:$0xf]
    %v294 = vld [vmem:[%s7 + $0x8] sm:$0xf]
    %v295 = vld [vmem:[%s7 + $0xc] sm:$0xf]
    %v296 = vld [vmem:[%s8] sm:$0x1]
    %v298 = vlaneseq
    %v299 = vshrl.u32 %v298, 7
    %v300 = vsub.s32 0, %v299
    %v301 = vrot.slane %v296, %v300
    %v307 = vunpack.c.l.b16 %v292
    %v308 = vunpack.c.l.b16 %v293
    %v309 = vunpack.c.l.b16 %v294
    %v310 = vunpack.c.l.b16 %v295
    %v311 = vpack.c.b16 %v308, %v307
    %v312 = vpack.c.b16 %v310, %v309
    %vm315 = vcmask 261120
    %v317 = vsel %vm315, %v291, 0
    %319 = vmatprep.subr.bf16.mxu0 0
    %320 = vmatpush1.bf16.msra.mxu0 0
    %321 = vmatprep.subr.bf16.mxu0 0
    %322 = vmatpush1.bf16.msra.mxu0 0
    %323 = vmatprep.subr.bf16.mxu0 0
    %324 = vmatpush1.bf16.msra.mxu0 0
    %325 = vmatprep.subr.bf16.mxu0 0
    %326 = vmatpush1.bf16.msra.mxu0 0
    %327 = vmatprep.subr.bf16.mxu0 0
    %328 = vmatpush1.bf16.msra.mxu0 0
    %329 = vmatprep.subr.bf16.mxu0 0
    %330 = vmatpush1.bf16.msra.mxu0 0
    %331 = vmatprep.subr.bf16.mxu0 0
    %332 = vmatpush1.bf16.msra.mxu0 %v312
    %333 = vmatprep.subr.bf16.mxu0 0
    %334 = vmatpush1.bf16.msra.mxu0 %v311
    %335 = vmatprep.subr.bf16.mxu0 0
    %336 = vmatpush2.bf16.msra.mxu0 0
    %337 = vmatprep.subr.bf16.mxu0 0
    %338 = vmatpush2.bf16.msra.mxu0 0
    %339 = vmatprep.subr.bf16.mxu0 0
    %340 = vmatpush2.bf16.msra.mxu0 0
    %341 = vmatprep.subr.bf16.mxu0 0
    %342 = vmatpush2.bf16.msra.mxu0 0
    %343 = vmatprep.subr.bf16.mxu0 0
    %344 = vmatpush2.bf16.msra.mxu0 0
    %345 = vmatprep.subr.bf16.mxu0 0
    %346 = vmatpush2.bf16.msra.mxu0 0
    %347 = vmatprep.subr.bf16.mxu0 0
    %348 = vmatpush2.bf16.msra.mxu0 0
    %349 = vmatprep.subr.bf16.mxu0 0
    %350 = vmatpush2.bf16.msra.mxu0 0
    %351 = vmatprep.mubr.bf16.mxu0 0
    %352 = vmatmul.mubr.bf16.gmra.mxu0 %v317
    %v353 = vpop.f32.mrf.mxu0
    %v354 = vadd.f32 %v301, %v353
    %v355 = vpop.f32.mrf.mxu0
    %v356 = vpop.f32.mrf.mxu0
    %v357 = vpop.f32.mrf.mxu0
    %358 = vdwg.mxu0
    %359 = vst [vmem:[#allocation2] sm:$0xff] %v354
    // Predicated region
    $region38: #{tpu_custom_call.1} parent=1 // pred_check
      _
    $region39: #{tpu_custom_call.1} parent=1 // pred_check_branch
      %361 = sbr.rel (0) target = $region41
    $region40: #{tpu_custom_call.1} parent=1 // pred_region
      %s363 = ssub.s32 128, 128
      %364 = vsyncadd [#allocation3], %s363
      %s366 = sshll.u32 [#allocation2], 4
      %s367 = int_to_ptr.vmem [resolvable:$true] %s366
      %369 = dma.vmem_to_hbm [thread:$0]  %s367, 128, %s9, [#allocation3]
    $region41: #{tpu_custom_call.1} parent=1 // pred_fallthru
      _
    // Predicated region
    $region42: #{tpu_custom_call.1} parent=1 // pred_check
      _
    $region43: #{tpu_custom_call.1} parent=1 // pred_check_branch
      %371 = sbr.rel (0) target = $region45
    $region44: #{tpu_custom_call.1} parent=1 // pred_region
      %372 = dma.done [#allocation3], 128
    $region45: #{tpu_custom_call.1} parent=1 // pred_fallthru
      _
    %373 = vsyncpa [#allocation3], 1

</llo_original>
